<compile_context>
chip_gen: v6e
topology: v6e:2x2x1
jax: 0.10.0
libtpu: 0.0.40
codegen_flags: <defaults>
</compile_context>

<pallas_src>
import jax
import jax.numpy as jnp
from jax.experimental import pallas as pl
from jax.experimental.pallas import tpu as pltpu


def _round_up(x, m):
    return ((x + m - 1) // m) * m


def _pad_to(a, target_shape):
    pads = [(0, t - s) for s, t in zip(a.shape, target_shape)]
    if any(p[1] for p in pads):
        return jnp.pad(a, pads)
    return a


def _ensemble_mlp_kernel(x_ref, w_ref, b_ref, o_ref, acc_ref):
    # Block shapes:
    #   x_ref:   (E_TILE, TILE_M, TILE_K)
    #   w_ref:   (E_TILE, TILE_K, TILE_N)
    #   b_ref:   (E_TILE, 1,      TILE_N)
    #   o_ref:   (E_TILE, TILE_M, TILE_N)
    #   acc_ref: (E_TILE, TILE_M, TILE_N) float32 VMEM scratch
    k = pl.program_id(3)

    @pl.when(k == 0)
    def _init():
        acc_ref[...] = jnp.zeros_like(acc_ref)

    # Batched matmul over the E_TILE ensemble members of this block (MXU, f32 acc).
    acc_ref[...] += jnp.einsum(
        "emk,ekn->emn", x_ref[...], w_ref[...],
        preferred_element_type=jnp.float32)

    @pl.when(k == pl.num_programs(3) - 1)
    def _finalize():
        out = acc_ref[...] + b_ref[...].astype(jnp.float32)  # bias added exactly once
        o_ref[...] = out.astype(o_ref.dtype)


def parallelized_layer_mlp(x, W, b, *, tile_m=128, tile_n=128, tile_k=512,
                           e_tile=None, compute_dtype=None):
    """x: (E, B, D_in), W: (E, D_in, D_out), b: (E, 1, D_out) -> (E, B, D_out)."""
    E, B, D_in = x.shape
    _, _, D_out = W.shape
    assert W.shape == (E, D_in, D_out)
    assert b.shape == (E, 1, D_out)

    out_dtype = x.dtype
    if compute_dtype is not None:
        x = x.astype(compute_dtype)
        W = W.astype(compute_dtype)

    # --- Tile selection (lane-dense: last dims multiples of 128, sublane of 8).
    TILE_M = min(tile_m, _round_up(B, 8))          # multiple of 8
    TILE_N = min(tile_n, _round_up(D_out, 128))    # multiple of 128
    TILE_K = min(tile_k, _round_up(D_in, 128))     # multiple of 128

    if e_tile is None:
        # Largest divisor of E up to 8: amortizes per-step overhead, no E padding.
        e_tile = max(d for d in range(1, min(E, 8) + 1) if E % d == 0)
    assert E % e_tile == 0

    # --- Pad (layout plumbing) so every block is full and unmasked.
    Bp = _round_up(B, TILE_M)
    Kp = _round_up(D_in, TILE_K)
    Np = _round_up(D_out, TILE_N)
    x_p = _pad_to(x, (E, Bp, Kp))
    W_p = _pad_to(W, (E, Kp, Np))
    b_p = _pad_to(b, (E, 1, Np))

    grid = (E // e_tile, Bp // TILE_M, Np // TILE_N, Kp // TILE_K)

    out_p = pl.pallas_call(
        _ensemble_mlp_kernel,
        out_shape=jax.ShapeDtypeStruct((E, Bp, Np), out_dtype),
        grid_spec=pltpu.PrefetchScalarGridSpec(
            num_scalar_prefetch=0,
            grid=grid,
            in_specs=[
                pl.BlockSpec((e_tile, TILE_M, TILE_K),
                             lambda e, m, n, k: (e, m, k)),
                pl.BlockSpec((e_tile, TILE_K, TILE_N),
                             lambda e, m, n, k: (e, k, n)),
                pl.BlockSpec((e_tile, 1, TILE_N),
                             lambda e, m, n, k: (e, 0, n)),
            ],
            out_specs=pl.BlockSpec((e_tile, TILE_M, TILE_N),
                                   lambda e, m, n, k: (e, m, n)),
            scratch_shapes=[pltpu.VMEM((e_tile, TILE_M, TILE_N), jnp.float32)],
        ),
        compiler_params=pltpu.CompilerParams(
            dimension_semantics=("parallel", "parallel", "parallel", "arbitrary"),
        ),
    )(x_p, W_p, b_p)

    return out_p[:, :B, :D_out]


def init_params(key, ensemble_size, input_dim, output_dim,
                w_std_value=1.0, b_init_value=0.0):
    # Mirrors: W = fmod(randn(E, D_in, D_out), 2) * w_std ; b = zeros + b_init
    w = jax.random.normal(key, (ensemble_size, input_dim, output_dim),
                          dtype=jnp.float32)
    w = jnp.fmod(w, 2.0) * w_std_value
    b = jnp.zeros((ensemble_size, 1, output_dim), dtype=jnp.float32) + b_init_value
    return w, b


if __name__ == "__main__":
    ensemble_size = 4
    batch = 8
    input_dim = 32
    output_dim = 16

    key = jax.random.PRNGKey(0)
    k_w, k_x = jax.random.split(key)

    W, b = init_params(k_w, ensemble_size, input_dim, output_dim,
                       w_std_value=1.0, b_init_value=0.0)
    x = jax.random.normal(k_x, (ensemble_size, batch, input_dim),
                          dtype=jnp.float32)

    out = parallelized_layer_mlp(x, W, b)
    out = jax.block_until_ready(out)

    # Reference check against plain JAX (same semantics as x @ W + b in torch).
    ref = jnp.einsum("ebd,edo->ebo", x, W) + b
    assert out.shape == (ensemble_size, batch, output_dim)
    assert jnp.allclose(out, ref, atol=1e-5, rtol=1e-5)

    print("KERNEL_OK")
</pallas_src>

<mosaic_0001>
module attributes {stable_mosaic.version = 11 : i64} {
  func.func @_ensemble_mlp_kernel(%arg0: i32, %arg1: i32, %arg2: i32, %arg3: i32, %arg4: memref<4x8x128xf32, #tpu.memory_space<vmem>>, %arg5: memref<4x128x128xf32, #tpu.memory_space<vmem>>, %arg6: memref<4x1x128xf32, #tpu.memory_space<vmem>>, %arg7: memref<4x8x128xf32, #tpu.memory_space<vmem>>, %arg8: memref<4x8x128xf32, #tpu.memory_space<vmem>>) attributes {dimension_semantics = [#tpu.dimension_semantics<parallel>, #tpu.dimension_semantics<parallel>, #tpu.dimension_semantics<parallel>, #tpu.dimension_semantics<arbitrary>], iteration_bounds = array<i64: 1, 1, 1, 1>, scalar_prefetch = 0 : i64, scratch_operands = 1 : i64, tpu.core_type = #tpu.core_type<tc>, window_params = [{transform_indices = @transform_0, window_bounds = array<i64: 4, 8, 128>}, {transform_indices = @transform_1, window_bounds = array<i64: 4, 128, 128>}, {transform_indices = @transform_2, window_bounds = array<i64: 4, 1, 128>}, {transform_indices = @transform_3, window_bounds = array<i64: 4, 8, 128>}]} {
    %c0_i32 = arith.constant 0 : i32
    %0 = arith.cmpi eq, %arg3, %c0_i32 : i32
    %1 = arith.extui %0 : i1 to i32
    %c0_i32_0 = arith.constant 0 : i32
    %2 = arith.cmpi ne, %1, %c0_i32_0 : i32
    scf.if %2 {
      %cst_14 = arith.constant 0.000000e+00 : f32
      %12 = vector.broadcast %cst_14 : f32 to vector<4x8x128xf32>
      %c0_15 = arith.constant 0 : index
      %c0_16 = arith.constant 0 : index
      %c0_17 = arith.constant 0 : index
      %13 = vector.load %arg8[%c0_15, %c0_16, %c0_17] : memref<4x8x128xf32, #tpu.memory_space<vmem>>, vector<4x8x128xf32>
      tpu.vector_store %arg8[%c0_15, %c0_16, %c0_17], %12 {strides = array<i32>} : memref<4x8x128xf32, #tpu.memory_space<vmem>>, vector<4x8x128xf32>,
    } else {
    }
    %c0 = arith.constant 0 : index
    %c0_1 = arith.constant 0 : index
    %c0_2 = arith.constant 0 : index
    %3 = vector.load %arg8[%c0, %c0_1, %c0_2] : memref<4x8x128xf32, #tpu.memory_space<vmem>>, vector<4x8x128xf32>
    %c0_3 = arith.constant 0 : index
    %c0_4 = arith.constant 0 : index
    %c0_5 = arith.constant 0 : index
    %4 = vector.load %arg4[%c0_3, %c0_4, %c0_5] : memref<4x8x128xf32, #tpu.memory_space<vmem>>, vector<4x8x128xf32>
    %c0_6 = arith.constant 0 : index
    %c0_7 = arith.constant 0 : index
    %c0_8 = arith.constant 0 : index
    %5 = vector.load %arg5[%c0_6, %c0_7, %c0_8] : memref<4x128x128xf32, #tpu.memory_space<vmem>>, vector<4x128x128xf32>
    "tpu.trace_start"() <{level = 10 : i32, message = "emk,ekn->emn"}> : () -> ()
    %cst = arith.constant dense<0.000000e+00> : vector<4x8x128xf32>
    %6 = tpu.matmul %4, %5, %cst {dimension_numbers = #tpu.dot_dimension_numbers<[2], [1], [1], [2], [0, 0, 0, 1, 1, 2], [0], [0]>} : vector<4x8x128xf32>, vector<4x128x128xf32>, vector<4x8x128xf32> -> vector<4x8x128xf32>
    "tpu.trace_stop"() : () -> ()
    %7 = arith.addf %3, %6 : vector<4x8x128xf32>
    %c0_9 = arith.constant 0 : index
    %c0_10 = arith.constant 0 : index
    %c0_11 = arith.constant 0 : index
    %8 = vector.load %arg8[%c0_9, %c0_10, %c0_11] : memref<4x8x128xf32, #tpu.memory_space<vmem>>, vector<4x8x128xf32>
    tpu.vector_store %arg8[%c0_9, %c0_10, %c0_11], %7 {strides = array<i32>} : memref<4x8x128xf32, #tpu.memory_space<vmem>>, vector<4x8x128xf32>,
    %c0_i32_12 = arith.constant 0 : i32
    %9 = arith.cmpi eq, %arg3, %c0_i32_12 : i32
    %10 = arith.extui %9 : i1 to i32
    %c0_i32_13 = arith.constant 0 : i32
    %11 = arith.cmpi ne, %10, %c0_i32_13 : i32
    scf.if %11 {
      %c0_14 = arith.constant 0 : index
      %c0_15 = arith.constant 0 : index
      %c0_16 = arith.constant 0 : index
      %12 = vector.load %arg8[%c0_14, %c0_15, %c0_16] : memref<4x8x128xf32, #tpu.memory_space<vmem>>, vector<4x8x128xf32>
      %c0_17 = arith.constant 0 : index
      %c0_18 = arith.constant 0 : index
      %c0_19 = arith.constant 0 : index
      %13 = vector.load %arg6[%c0_17, %c0_18, %c0_19] : memref<4x1x128xf32, #tpu.memory_space<vmem>>, vector<4x1x128xf32>
      %14 = vector.broadcast %13 : vector<4x1x128xf32> to vector<4x8x128xf32>
      %15 = arith.addf %12, %14 : vector<4x8x128xf32>
      %c0_20 = arith.constant 0 : index
      %c0_21 = arith.constant 0 : index
      %c0_22 = arith.constant 0 : index
      %16 = vector.load %arg7[%c0_20, %c0_21, %c0_22] : memref<4x8x128xf32, #tpu.memory_space<vmem>>, vector<4x8x128xf32>
      tpu.vector_store %arg7[%c0_20, %c0_21, %c0_22], %15 {strides = array<i32>} : memref<4x8x128xf32, #tpu.memory_space<vmem>>, vector<4x8x128xf32>,
    } else {
    }
    return
  }
  func.func @transform_0(%arg0: i32, %arg1: i32, %arg2: i32, %arg3: i32) -> (i32, i32, i32) {
    %c0_i32 = arith.constant 0 : i32
    return %arg0, %arg1, %arg3 : i32, i32, i32
  }
  func.func @transform_1(%arg0: i32, %arg1: i32, %arg2: i32, %arg3: i32) -> (i32, i32, i32) {
    %c0_i32 = arith.constant 0 : i32
    return %arg0, %arg3, %arg2 : i32, i32, i32
  }
  func.func @transform_2(%arg0: i32, %arg1: i32, %arg2: i32, %arg3: i32) -> (i32, i32, i32) {
    %c0_i32 = arith.constant 0 : i32
    %c0_i32_0 = arith.constant 0 : i32
    return %arg0, %c0_i32, %arg2 : i32, i32, i32
  }
  func.func @transform_3(%arg0: i32, %arg1: i32, %arg2: i32, %arg3: i32) -> (i32, i32, i32) {
    %c0_i32 = arith.constant 0 : i32
    return %arg0, %arg1, %arg2 : i32, i32, i32
  }
}

</mosaic_0001>

<llo_original>
// kernel: tpu_custom_call.1
$region0: #{tpu_custom_call.1}
  #allocation0 [shape = 'u32[]', space=smem, size = 0x4, offset = 0x4, fixed_abs, tag = 'smem constant byte address 0x4 - core index']
  #allocation1 [shape = 'u32[144,128]{1,0:T(1,128)}', space=vmem, size = 0x12000, scoped, tag = 'internal scratch']
  #allocation2 [shape = 'f32[4,8,128]{2,1,0:T(8,128)}', space=vmem, size = 0x4000, scoped, tag = 'scratch operand']
  %s0 = inlined_call_operand.hbm [shape: f32[4,8,128], index: 0, kind: input, shape index: {}]
  %s1 = inlined_call_operand.hbm [shape: f32[4,128,128], index: 1, kind: input, shape index: {}]
  %s2 = inlined_call_operand.hbm [shape: f32[4,1,128], index: 2, kind: input, shape index: {}]
  %s3 = inlined_call_operand.hbm [shape: f32[4,8,128], index: 3, kind: output, shape index: {}]
  %s4 = sld [smem:[#allocation0]]
  $region42: #{tpu_custom_call.1} parent=0
    _
  %s6 = ssub.s32 1, %s4
  %s7 = scalar_select 0, %s6, %s4
  $region1: #{tpu_custom_call.1} parent=0
    #allocation3 [shape = 'u8[16384]{0}', space=vmem, size = 0x4000, scoped, tag = 'input window, operand 0, single buffered']
    #allocation4 [shape = 's32[1]{0}', space=sflag, size = 0x4, scoped, tag = 'scoped memory for tpu_custom_call.1']
    #allocation5 [shape = 's32[1]{0}', space=sflag, size = 0x4, scoped, tag = 'scoped memory for tpu_custom_call.1']
    #allocation6 [shape = 'u8[262144]{0}', space=vmem, size = 0x40000, scoped, tag = 'input window, operand 1, single buffered']
    #allocation7 [shape = 's32[1]{0}', space=sflag, size = 0x4, scoped, tag = 'scoped memory for tpu_custom_call.1']
    #allocation8 [shape = 'u8[2048]{0}', space=vmem, size = 0x800, scoped, tag = 'input window, operand 2, single buffered']
    #allocation9 [shape = 'u8[16384]{0}', space=vmem, size = 0x4000, scoped, tag = 'output window, operand 0, single buffered']
    %8 = vsyncpa [#allocation4], 0
    %9 = vsyncpa [#allocation7], 0
    %10 = vsyncpa [#allocation5], 0
    // Predicated region
    $region2: #{tpu_custom_call.1} parent=1 // pred_check
      _
    $region3: #{tpu_custom_call.1} parent=1 // pred_check_branch
      %12 = sbr.rel (0) target = $region5
    $region4: #{tpu_custom_call.1} parent=1 // pred_region
      %s14 = ssub.s32 512, 512
      %15 = vsyncadd [#allocation4], %s14
      %s16 = sshll.u32 [#allocation3], 4
      %s17 = int_to_ptr.vmem [resolvable:$true] %s16
      %22 = dma.hbm_to_vmem [thread:$0]  %s0, 512, %s17, [#allocation4], 128, 128, 8
    $region5: #{tpu_custom_call.1} parent=1 // pred_fallthru
      _
    // Predicated region
    $region6: #{tpu_custom_call.1} parent=1 // pred_check
      _
    $region7: #{tpu_custom_call.1} parent=1 // pred_check_branch
      %24 = sbr.rel (0) target = $region9
    $region8: #{tpu_custom_call.1} parent=1 // pred_region
      %s26 = ssub.s32 8192, 8192
      %27 = vsyncadd [#allocation7], %s26
      %s28 = sshll.u32 [#allocation6], 4
      %s29 = int_to_ptr.vmem [resolvable:$true] %s28
      %34 = dma.hbm_to_vmem [thread:$0]  %s1, 8192, %s29, [#allocation7], 128, 128, 8
    $region9: #{tpu_custom_call.1} parent=1 // pred_fallthru
      _
    // Predicated region
    $region10: #{tpu_custom_call.1} parent=1 // pred_check
      _
    $region11: #{tpu_custom_call.1} parent=1 // pred_check_branch
      %36 = sbr.rel (0) target = $region13
    $region12: #{tpu_custom_call.1} parent=1 // pred_region
      %s38 = ssub.s32 64, 64
      %39 = vsyncadd [#allocation7], %s38
      %s40 = sshll.u32 [#allocation8], 4
      %s41 = int_to_ptr.vmem [resolvable:$true] %s40
      %46 = dma.hbm_to_vmem [thread:$0]  %s2, 64, %s41, [#allocation7], 16, 16, 1
    $region13: #{tpu_custom_call.1} parent=1 // pred_fallthru
      _
    // Predicated region
    $region14: #{tpu_custom_call.1} parent=1 // pred_check
      _
    $region15: #{tpu_custom_call.1} parent=1 // pred_check_branch
      %48 = sbr.rel (0) target = $region17
    $region16: #{tpu_custom_call.1} parent=1 // pred_region
      %49 = dma.done [#allocation4], 512
    $region17: #{tpu_custom_call.1} parent=1 // pred_fallthru
      _
    // Predicated region
    $region18: #{tpu_custom_call.1} parent=1 // pred_check
      _
    $region19: #{tpu_custom_call.1} parent=1 // pred_check_branch
      %51 = sbr.rel (0) target = $region21
    $region20: #{tpu_custom_call.1} parent=1 // pred_region
      %52 = dma.done [#allocation7], 8192
    $region21: #{tpu_custom_call.1} parent=1 // pred_fallthru
      _
    // Predicated region
    $region22: #{tpu_custom_call.1} parent=1 // pred_check
      _
    $region23: #{tpu_custom_call.1} parent=1 // pred_check_branch
      %54 = sbr.rel (0) target = $region25
    $region24: #{tpu_custom_call.1} parent=1 // pred_region
      %55 = dma.done [#allocation7], 64
    $region25: #{tpu_custom_call.1} parent=1 // pred_fallthru
      _
    %p56 = scmp.eq.s32.totalorder 0, 0
    // Predicated region
    $region26: #{tpu_custom_call.1} parent=1 // pred_check
      %p57 = pneg %p56
    $region27: #{tpu_custom_call.1} parent=1 // pred_check_branch
      %59 = sbr.rel (%p57) target = $region29
    $region28: #{tpu_custom_call.1} parent=1 // pred_region
      %60 = vst [vmem:[#allocation2] sm:$0xff] 0.0
      %61 = vst [vmem:[#allocation2 + $0x8] sm:$0xff] 0.0
      %62 = vst [vmem:[#allocation2 + $0x10] sm:$0xff] 0.0
      %63 = vst [vmem:[#allocation2 + $0x18] sm:$0xff] 0.0
    $region29: #{tpu_custom_call.1} parent=1 // pred_fallthru
      _
    %v64 = vld [vmem:[#allocation2] sm:$0xff]
    %v65 = vld [vmem:[#allocation2 + $0x8] sm:$0xff]
    %v66 = vld [vmem:[#allocation2 + $0x10] sm:$0xff]
    %v67 = vld [vmem:[#allocation2 + $0x18] sm:$0xff]
    %v68 = vld [vmem:[#allocation3] sm:$0xff]
    %v69 = vld [vmem:[#allocation3 + $0x8] sm:$0xff]
    %v70 = vld [vmem:[#allocation3 + $0x10] sm:$0xff]
    %v71 = vld [vmem:[#allocation3 + $0x18] sm:$0xff]
    %v72 = vld [vmem:[#allocation6] sm:$0xff]
    %v73 = vld [vmem:[#allocation6 + $0x8] sm:$0xff]
    %v74 = vld [vmem:[#allocation6 + $0x10] sm:$0xff]
    %v75 = vld [vmem:[#allocation6 + $0x18] sm:$0xff]
    %v76 = vld [vmem:[#allocation6 + $0x20] sm:$0xff]
    %v77 = vld [vmem:[#allocation6 + $0x28] sm:$0xff]
    %v78 = vld [vmem:[#allocation6 + $0x30] sm:$0xff]
    %v79 = vld [vmem:[#allocation6 + $0x38] sm:$0xff]
    %v80 = vld [vmem:[#allocation6 + $0x40] sm:$0xff]
    %v81 = vld [vmem:[#allocation6 + $0x48] sm:$0xff]
    %v82 = vld [vmem:[#allocation6 + $0x50] sm:$0xff]
    %v83 = vld [vmem:[#allocation6 + $0x58] sm:$0xff]
    %v84 = vld [vmem:[#allocation6 + $0x60] sm:$0xff]
    %v85 = vld [vmem:[#allocation6 + $0x68] sm:$0xff]
    %v86 = vld [vmem:[#allocation6 + $0x70] sm:$0xff]
    %v87 = vld [vmem:[#allocation6 + $0x78] sm:$0xff]
    %v88 = vld [vmem:[#allocation6 + $0x80] sm:$0xff]
    %v89 = vld [vmem:[#allocation6 + $0x88] sm:$0xff]
    %v90 = vld [vmem:[#allocation6 + $0x90] sm:$0xff]
    %v91 = vld [vmem:[#allocation6 + $0x98] sm:$0xff]
    %v92 = vld [vmem:[#allocation6 + $0xa0] sm:$0xff]
    %v93 = vld [vmem:[#allocation6 + $0xa8] sm:$0xff]
    %v94 = vld [vmem:[#allocation6 + $0xb0] sm:$0xff]
    %v95 = vld [vmem:[#allocation6 + $0xb8] sm:$0xff]
    %v96 = vld [vmem:[#allocation6 + $0xc0] sm:$0xff]
    %v97 = vld [vmem:[#allocation6 + $0xc8] sm:$0xff]
    %v98 = vld [vmem:[#allocation6 + $0xd0] sm:$0xff]
    %v99 = vld [vmem:[#allocation6 + $0xd8] sm:$0xff]
    %v100 = vld [vmem:[#allocation6 + $0xe0] sm:$0xff]
    %v101 = vld [vmem:[#allocation6 + $0xe8] sm:$0xff]
    %v102 = vld [vmem:[#allocation6 + $0xf0] sm:$0xff]
    %v103 = vld [vmem:[#allocation6 + $0xf8] sm:$0xff]
    %v104 = vld [vmem:[#allocation6 + $0x100] sm:$0xff]
    %v105 = vld [vmem:[#allocation6 + $0x108] sm:$0xff]
    %v106 = vld [vmem:[#allocation6 + $0x110] sm:$0xff]
    %v107 = vld [vmem:[#allocation6 + $0x118] sm:$0xff]
    %v108 = vld [vmem:[#allocation6 + $0x120] sm:$0xff]
    %v109 = vld [vmem:[#allocation6 + $0x128] sm:$0xff]
    %v110 = vld [vmem:[#allocation6 + $0x130] sm:$0xff]
    %v111 = vld [vmem:[#allocation6 + $0x138] sm:$0xff]
    %v112 = vld [vmem:[#allocation6 + $0x140] sm:$0xff]
    %v113 = vld [vmem:[#allocation6 + $0x148] sm:$0xff]
    %v114 = vld [vmem:[#allocation6 + $0x150] sm:$0xff]
    %v115 = vld [vmem:[#allocation6 + $0x158] sm:$0xff]
    %v116 = vld [vmem:[#allocation6 + $0x160] sm:$0xff]
    %v117 = vld [vmem:[#allocation6 + $0x168] sm:$0xff]
    %v118 = vld [vmem:[#allocation6 + $0x170] sm:$0xff]
    %v119 = vld [vmem:[#allocation6 + $0x178] sm:$0xff]
    %v120 = vld [vmem:[#allocation6 + $0x180] sm:$0xff]
    %v121 = vld [vmem:[#allocation6 + $0x188] sm:$0xff]
    %v122 = vld [vmem:[#allocation6 + $0x190] sm:$0xff]
    %v123 = vld [vmem:[#allocation6 + $0x198] sm:$0xff]
    %v124 = vld [vmem:[#allocation6 + $0x1a0] sm:$0xff]
    %v125 = vld [vmem:[#allocation6 + $0x1a8] sm:$0xff]
    %v126 = vld [vmem:[#allocation6 + $0x1b0] sm:$0xff]
    %v127 = vld [vmem:[#allocation6 + $0x1b8] sm:$0xff]
    %v128 = vld [vmem:[#allocation6 + $0x1c0] sm:$0xff]
    %v129 = vld [vmem:[#allocation6 + $0x1c8] sm:$0xff]
    %v130 = vld [vmem:[#allocation6 + $0x1d0] sm:$0xff]
    %v131 = vld [vmem:[#allocation6 + $0x1d8] sm:$0xff]
    %v132 = vld [vmem:[#allocation6 + $0x1e0] sm:$0xff]
    %v133 = vld [vmem:[#allocation6 + $0x1e8] sm:$0xff]
    %v134 = vld [vmem:[#allocation6 + $0x1f0] sm:$0xff]
    %v135 = vld [vmem:[#allocation6 + $0x1f8] sm:$0xff]
    %136 = vmatprep.subr.mxu0 0.0
    %137 = vmatpush1.msra.mxu0 %v87
    %138 = vmatprep.subr.mxu0 0.0
    %139 = vmatpush1.msra.mxu0 %v86
    %140 = vmatprep.subr.mxu0 0.0
    %141 = vmatpush1.msra.mxu0 %v85
    %142 = vmatprep.subr.mxu0 0.0
    %143 = vmatpush1.msra.mxu0 %v84
    %144 = vmatprep.subr.mxu0 0.0
    %145 = vmatpush1.msra.mxu0 %v83
    %146 = vmatprep.subr.mxu0 0.0
    %147 = vmatpush1.msra.mxu0 %v82
    %148 = vmatprep.subr.mxu0 0.0
    %149 = vmatpush1.msra.mxu0 %v81
    %150 = vmatprep.subr.mxu0 0.0
    %151 = vmatpush1.msra.mxu0 %v80
    %152 = vmatprep.subr.mxu0 0.0
    %153 = vmatpush1.msra.mxu0 %v79
    %154 = vmatprep.subr.mxu0 0.0
    %155 = vmatpush1.msra.mxu0 %v78
    %156 = vmatprep.subr.mxu0 0.0
    %157 = vmatpush1.msra.mxu0 %v77
    %158 = vmatprep.subr.mxu0 0.0
    %159 = vmatpush1.msra.mxu0 %v76
    %160 = vmatprep.subr.mxu0 0.0
    %161 = vmatpush1.msra.mxu0 %v75
    %162 = vmatprep.subr.mxu0 0.0
    %163 = vmatpush1.msra.mxu0 %v74
    %164 = vmatprep.subr.mxu0 0.0
    %165 = vmatpush1.msra.mxu0 %v73
    %166 = vmatprep.subr.mxu0 0.0
    %167 = vmatpush1.msra.mxu0 %v72
    %168 = vmatprep.subr.mxu0 0.0
    %169 = vmatpush2.msra.mxu0 0.0
    %170 = vmatprep.subr.mxu0 0.0
    %171 = vmatpush2.msra.mxu0 0.0
    %172 = vmatprep.subr.mxu0 0.0
    %173 = vmatpush2.msra.mxu0 0.0
    %174 = vmatprep.subr.mxu0 0.0
    %175 = vmatpush2.msra.mxu0 0.0
    %176 = vmatprep.subr.mxu0 0.0
    %177 = vmatpush2.msra.mxu0 0.0
    %178 = vmatprep.subr.mxu0 0.0
    %179 = vmatpush2.msra.mxu0 0.0
    %180 = vmatprep.subr.mxu0 0.0
    %181 = vmatpush2.msra.mxu0 0.0
    %182 = vmatprep.subr.mxu0 0.0
    %183 = vmatpush2.msra.mxu0 0.0
    %184 = vmatprep.subr.mxu0 0.0
    %185 = vmatpush2.msra.mxu0 0.0
    %186 = vmatprep.subr.mxu0 0.0
    %187 = vmatpush2.msra.mxu0 0.0
    %188 = vmatprep.subr.mxu0 0.0
    %189 = vmatpush2.msra.mxu0 0.0
    %190 = vmatprep.subr.mxu0 0.0
    %191 = vmatpush2.msra.mxu0 0.0
    %192 = vmatprep.subr.mxu0 0.0
    %193 = vmatpush2.msra.mxu0 0.0
    %194 = vmatprep.subr.mxu0 0.0
    %195 = vmatpush2.msra.mxu0 0.0
    %196 = vmatprep.subr.mxu0 0.0
    %197 = vmatpush2.msra.mxu0 0.0
    %198 = vmatprep.subr.mxu0 0.0
    %199 = vmatpush2.msra.mxu0 0.0
    %200 = vmatprep.mubr.f32.mxu0 0.0
    %201 = vmatmul.mubr.f32.gmra.mxu0 %v68
    %v202 = vpop.f32.mrf.mxu0
    %v203 = vadd.f32 0.0, %v202
    %v204 = vpop.f32.mrf.mxu0
    %205 = vdwg.mxu0
    %206 = vmatprep.subr.mxu0 0.0
    %207 = vmatpush1.msra.mxu0 %v103
    %208 = vmatprep.subr.mxu0 0.0
    %209 = vmatpush1.msra.mxu0 %v102
    %210 = vmatprep.subr.mxu0 0.0
    %211 = vmatpush1.msra.mxu0 %v101
    %212 = vmatprep.subr.mxu0 0.0
    %213 = vmatpush1.msra.mxu0 %v100
    %214 = vmatprep.subr.mxu0 0.0
    %215 = vmatpush1.msra.mxu0 %v99
    %216 = vmatprep.subr.mxu0 0.0
    %217 = vmatpush1.msra.mxu0 %v98
    %218 = vmatprep.subr.mxu0 0.0
    %219 = vmatpush1.msra.mxu0 %v97
    %220 = vmatprep.subr.mxu0 0.0
    %221 = vmatpush1.msra.mxu0 %v96
    %222 = vmatprep.subr.mxu0 0.0
    %223 = vmatpush1.msra.mxu0 %v95
    %224 = vmatprep.subr.mxu0 0.0
    %225 = vmatpush1.msra.mxu0 %v94
    %226 = vmatprep.subr.mxu0 0.0
    %227 = vmatpush1.msra.mxu0 %v93
    %228 = vmatprep.subr.mxu0 0.0
    %229 = vmatpush1.msra.mxu0 %v92
    %230 = vmatprep.subr.mxu0 0.0
    %231 = vmatpush1.msra.mxu0 %v91
    %232 = vmatprep.subr.mxu0 0.0
    %233 = vmatpush1.msra.mxu0 %v90
    %234 = vmatprep.subr.mxu0 0.0
    %235 = vmatpush1.msra.mxu0 %v89
    %236 = vmatprep.subr.mxu0 0.0
    %237 = vmatpush1.msra.mxu0 %v88
    %238 = vmatprep.subr.mxu0 0.0
    %239 = vmatpush2.msra.mxu0 0.0
    %240 = vmatprep.subr.mxu0 0.0
    %241 = vmatpush2.msra.mxu0 0.0
    %242 = vmatprep.subr.mxu0 0.0
    %243 = vmatpush2.msra.mxu0 0.0
    %244 = vmatprep.subr.mxu0 0.0
    %245 = vmatpush2.msra.mxu0 0.0
    %246 = vmatprep.subr.mxu0 0.0
    %247 = vmatpush2.msra.mxu0 0.0
    %248 = vmatprep.subr.mxu0 0.0
    %249 = vmatpush2.msra.mxu0 0.0
    %250 = vmatprep.subr.mxu0 0.0
    %251 = vmatpush2.msra.mxu0 0.0
    %252 = vmatprep.subr.mxu0 0.0
    %253 = vmatpush2.msra.mxu0 0.0
    %254 = vmatprep.subr.mxu0 0.0
    %255 = vmatpush2.msra.mxu0 0.0
    %256 = vmatprep.subr.mxu0 0.0
    %257 = vmatpush2.msra.mxu0 0.0
    %258 = vmatprep.subr.mxu0 0.0
    %259 = vmatpush2.msra.mxu0 0.0
    %260 = vmatprep.subr.mxu0 0.0
    %261 = vmatpush2.msra.mxu0 0.0
    %262 = vmatprep.subr.mxu0 0.0
    %263 = vmatpush2.msra.mxu0 0.0
    %264 = vmatprep.subr.mxu0 0.0
    %265 = vmatpush2.msra.mxu0 0.0
    %266 = vmatprep.subr.mxu0 0.0
    %267 = vmatpush2.msra.mxu0 0.0
    %268 = vmatprep.subr.mxu0 0.0
    %269 = vmatpush2.msra.mxu0 0.0
    %270 = vmatprep.mubr.f32.mxu0 0.0
    %271 = vmatmul.mubr.f32.gmra.mxu0 %v69
    %v272 = vpop.f32.mrf.mxu0
    %v273 = vadd.f32 0.0, %v272
    %v274 = vpop.f32.mrf.mxu0
    %275 = vdwg.mxu0
    %276 = vmatprep.subr.mxu0 0.0
    %277 = vmatpush1.msra.mxu0 %v119
    %278 = vmatprep.subr.mxu0 0.0
    %279 = vmatpush1.msra.mxu0 %v118
    %280 = vmatprep.subr.mxu0 0.0
    %281 = vmatpush1.msra.mxu0 %v117
    %282 = vmatprep.subr.mxu0 0.0
    %283 = vmatpush1.msra.mxu0 %v116
    %284 = vmatprep.subr.mxu0 0.0
    %285 = vmatpush1.msra.mxu0 %v115
    %286 = vmatprep.subr.mxu0 0.0
    %287 = vmatpush1.msra.mxu0 %v114
    %288 = vmatprep.subr.mxu0 0.0
    %289 = vmatpush1.msra.mxu0 %v113
    %290 = vmatprep.subr.mxu0 0.0
    %291 = vmatpush1.msra.mxu0 %v112
    %292 = vmatprep.subr.mxu0 0.0
    %293 = vmatpush1.msra.mxu0 %v111
    %294 = vmatprep.subr.mxu0 0.0
    %295 = vmatpush1.msra.mxu0 %v110
    %296 = vmatprep.subr.mxu0 0.0
    %297 = vmatpush1.msra.mxu0 %v109
    %298 = vmatprep.subr.mxu0 0.0
    %299 = vmatpush1.msra.mxu0 %v108
    %300 = vmatprep.subr.mxu0 0.0
    %301 = vmatpush1.msra.mxu0 %v107
    %302 = vmatprep.subr.mxu0 0.0
    %303 = vmatpush1.msra.mxu0 %v106
    %304 = vmatprep.subr.mxu0 0.0
    %305 = vmatpush1.msra.mxu0 %v105
    %306 = vmatprep.subr.mxu0 0.0
    %307 = vmatpush1.msra.mxu0 %v104
    %308 = vmatprep.subr.mxu0 0.0
    %309 = vmatpush2.msra.mxu0 0.0
    %310 = vmatprep.subr.mxu0 0.0
    %311 = vmatpush2.msra.mxu0 0.0
    %312 = vmatprep.subr.mxu0 0.0
    %313 = vmatpush2.msra.mxu0 0.0
    %314 = vmatprep.subr.mxu0 0.0
    %315 = vmatpush2.msra.mxu0 0.0
    %316 = vmatprep.subr.mxu0 0.0
    %317 = vmatpush2.msra.mxu0 0.0
    %318 = vmatprep.subr.mxu0 0.0
    %319 = vmatpush2.msra.mxu0 0.0
    %320 = vmatprep.subr.mxu0 0.0
    %321 = vmatpush2.msra.mxu0 0.0
    %322 = vmatprep.subr.mxu0 0.0
    %323 = vmatpush2.msra.mxu0 0.0
    %324 = vmatprep.subr.mxu0 0.0
    %325 = vmatpush2.msra.mxu0 0.0
    %326 = vmatprep.subr.mxu0 0.0
    %327 = vmatpush2.msra.mxu0 0.0
    %328 = vmatprep.subr.mxu0 0.0
    %329 = vmatpush2.msra.mxu0 0.0
    %330 = vmatprep.subr.mxu0 0.0
    %331 = vmatpush2.msra.mxu0 0.0
    %332 = vmatprep.subr.mxu0 0.0
    %333 = vmatpush2.msra.mxu0 0.0
    %334 = vmatprep.subr.mxu0 0.0
    %335 = vmatpush2.msra.mxu0 0.0
    %336 = vmatprep.subr.mxu0 0.0
    %337 = vmatpush2.msra.mxu0 0.0
    %338 = vmatprep.subr.mxu0 0.0
    %339 = vmatpush2.msra.mxu0 0.0
    %340 = vmatprep.mubr.f32.mxu0 0.0
    %341 = vmatmul.mubr.f32.gmra.mxu0 %v70
    %v342 = vpop.f32.mrf.mxu0
    %v343 = vadd.f32 0.0, %v342
    %v344 = vpop.f32.mrf.mxu0
    %345 = vdwg.mxu0
    %346 = vmatprep.subr.mxu0 0.0
    %347 = vmatpush1.msra.mxu0 %v135
    %348 = vmatprep.subr.mxu0 0.0
    %349 = vmatpush1.msra.mxu0 %v134
    %350 = vmatprep.subr.mxu0 0.0
    %351 = vmatpush1.msra.mxu0 %v133
    %352 = vmatprep.subr.mxu0 0.0
    %353 = vmatpush1.msra.mxu0 %v132
    %354 = vmatprep.subr.mxu0 0.0
    %355 = vmatpush1.msra.mxu0 %v131
    %356 = vmatprep.subr.mxu0 0.0
    %357 = vmatpush1.msra.mxu0 %v130
    %358 = vmatprep.subr.mxu0 0.0
    %359 = vmatpush1.msra.mxu0 %v129
    %360 = vmatprep.subr.mxu0 0.0
    %361 = vmatpush1.msra.mxu0 %v128
    %362 = vmatprep.subr.mxu0 0.0
    %363 = vmatpush1.msra.mxu0 %v127
    %364 = vmatprep.subr.mxu0 0.0
    %365 = vmatpush1.msra.mxu0 %v126
    %366 = vmatprep.subr.mxu0 0.0
    %367 = vmatpush1.msra.mxu0 %v125
    %368 = vmatprep.subr.mxu0 0.0
    %369 = vmatpush1.msra.mxu0 %v124
    %370 = vmatprep.subr.mxu0 0.0
    %371 = vmatpush1.msra.mxu0 %v123
    %372 = vmatprep.subr.mxu0 0.0
    %373 = vmatpush1.msra.mxu0 %v122
    %374 = vmatprep.subr.mxu0 0.0
    %375 = vmatpush1.msra.mxu0 %v121
    %376 = vmatprep.subr.mxu0 0.0
    %377 = vmatpush1.msra.mxu0 %v120
    %378 = vmatprep.subr.mxu0 0.0
    %379 = vmatpush2.msra.mxu0 0.0
    %380 = vmatprep.subr.mxu0 0.0
    %381 = vmatpush2.msra.mxu0 0.0
    %382 = vmatprep.subr.mxu0 0.0
    %383 = vmatpush2.msra.mxu0 0.0
    %384 = vmatprep.subr.mxu0 0.0
    %385 = vmatpush2.msra.mxu0 0.0
    %386 = vmatprep.subr.mxu0 0.0
    %387 = vmatpush2.msra.mxu0 0.0
    %388 = vmatprep.subr.mxu0 0.0
    %389 = vmatpush2.msra.mxu0 0.0
    %390 = vmatprep.subr.mxu0 0.0
    %391 = vmatpush2.msra.mxu0 0.0
    %392 = vmatprep.subr.mxu0 0.0
    %393 = vmatpush2.msra.mxu0 0.0
    %394 = vmatprep.subr.mxu0 0.0
    %395 = vmatpush2.msra.mxu0 0.0
    %396 = vmatprep.subr.mxu0 0.0
    %397 = vmatpush2.msra.mxu0 0.0
    %398 = vmatprep.subr.mxu0 0.0
    %399 = vmatpush2.msra.mxu0 0.0
    %400 = vmatprep.subr.mxu0 0.0
    %401 = vmatpush2.msra.mxu0 0.0
    %402 = vmatprep.subr.mxu0 0.0
    %403 = vmatpush2.msra.mxu0 0.0
    %404 = vmatprep.subr.mxu0 0.0
    %405 = vmatpush2.msra.mxu0 0.0
    %406 = vmatprep.subr.mxu0 0.0
    %407 = vmatpush2.msra.mxu0 0.0
    %408 = vmatprep.subr.mxu0 0.0
    %409 = vmatpush2.msra.mxu0 0.0
    %410 = vmatprep.mubr.f32.mxu0 0.0
    %411 = vmatmul.mubr.f32.gmra.mxu0 %v71
    %v412 = vpop.f32.mrf.mxu0
    %v413 = vadd.f32 0.0, %v412
    %v414 = vpop.f32.mrf.mxu0
    %415 = vdwg.mxu0
    %v416 = vadd.f32 %v64, %v203
    %v417 = vadd.f32 %v65, %v273
    %v418 = vadd.f32 %v66, %v343
    %v419 = vadd.f32 %v67, %v413
    %420 = vst [vmem:[#allocation2] sm:$0xff] %v416
    %421 = vst [vmem:[#allocation2 + $0x8] sm:$0xff] %v417
    %422 = vst [vmem:[#allocation2 + $0x10] sm:$0xff] %v418
    %423 = vst [vmem:[#allocation2 + $0x18] sm:$0xff] %v419
    // Predicated region
    $region30: #{tpu_custom_call.1} parent=1 // pred_check
      %p424 = pneg %p56
    $region31: #{tpu_custom_call.1} parent=1 // pred_check_branch
      %426 = sbr.rel (%p424) target = $region33
    $region32: #{tpu_custom_call.1} parent=1 // pred_region
      %v427 = vld [vmem:[#allocation2] sm:$0xff]
      %v428 = vld [vmem:[#allocation2 + $0x8] sm:$0xff]
      %v429 = vld [vmem:[#allocation2 + $0x10] sm:$0xff]
      %v430 = vld [vmem:[#allocation2 + $0x18] sm:$0xff]
      %v431 = vld [vmem:[#allocation8] sm:$0x1]
      %v432 = vld [vmem:[#allocation8 + $0x1] sm:$0x1]
      %v433 = vld [vmem:[#allocation8 + $0x2] sm:$0x1]
      %v434 = vld [vmem:[#allocation8 + $0x3] sm:$0x1]
      %v439 = vlaneseq
      %v440 = vshrl.u32 %v439, 7
      %v441 = vsub.s32 0, %v440
      %v442 = vrot.slane %v431, %v441
      %v443 = vlaneseq
      %v444 = vshrl.u32 %v443, 7
      %v445 = vsub.s32 0, %v444
      %v446 = vrot.slane %v432, %v445
      %v447 = vlaneseq
      %v448 = vshrl.u32 %v447, 7
      %v449 = vsub.s32 0, %v448
      %v450 = vrot.slane %v433, %v449
      %v451 = vlaneseq
      %v452 = vshrl.u32 %v451, 7
      %v453 = vsub.s32 0, %v452
      %v454 = vrot.slane %v434, %v453
      %v459 = vadd.f32 %v427, %v442
      %v460 = vadd.f32 %v428, %v446
      %v461 = vadd.f32 %v429, %v450
      %v462 = vadd.f32 %v430, %v454
      %463 = vst [vmem:[#allocation9] sm:$0xff] %v459
      %464 = vst [vmem:[#allocation9 + $0x8] sm:$0xff] %v460
      %465 = vst [vmem:[#allocation9 + $0x10] sm:$0xff] %v461
      %466 = vst [vmem:[#allocation9 + $0x18] sm:$0xff] %v462
    $region33: #{tpu_custom_call.1} parent=1 // pred_fallthru
      _
    // Predicated region
    $region34: #{tpu_custom_call.1} parent=1 // pred_check
      _
    $region35: #{tpu_custom_call.1} parent=1 // pred_check_branch
      %468 = sbr.rel (0) target = $region37
    $region36: #{tpu_custom_call.1} parent=1 // pred_region
      %s470 = ssub.s32 512, 512
      %471 = vsyncadd [#allocation5], %s470
      %s472 = sshll.u32 [#allocation9], 4
      %s473 = int_to_ptr.vmem [resolvable:$true] %s472
      %478 = dma.vmem_to_hbm [thread:$0]  %s473, 512, %s3, [#allocation5], 128, 128, 8
    $region37: #{tpu_custom_call.1} parent=1 // pred_fallthru
      _
    // Predicated region
    $region38: #{tpu_custom_call.1} parent=1 // pred_check
      _
    $region39: #{tpu_custom_call.1} parent=1 // pred_check_branch
      %480 = sbr.rel (0) target = $region41
    $region40: #{tpu_custom_call.1} parent=1 // pred_region
      %481 = dma.done [#allocation5], 512
    $region41: #{tpu_custom_call.1} parent=1 // pred_fallthru
      _
    %482 = vsyncpa [#allocation4], 1
    %483 = vsyncpa [#allocation7], 1
    %484 = vsyncpa [#allocation5], 1

</llo_original>
